<compile_context>
chip_gen: v7x
topology: tpu7x:2x2x1
jax: 0.10.0
libtpu: 0.0.40
codegen_flags: <defaults>
</compile_context>

<pallas_src>
import functools

import jax
import jax.numpy as jnp
from jax.experimental import pallas as pl
from jax.experimental.pallas import tpu as pltpu

_LANE = 128          # lane (last-dim) padding granularity for hidden/output widths
_SUBLANE = 8         # sublane granularity for the batch dim
_TARGET_TILE = 512   # rows per grid step (measured ~85% of HBM roofline vs ~63% at 256)
_GRIDLESS_MAX = 128  # at/below this many padded rows: single-block gridless call


def _round_up(n, m):
    return ((n + m - 1) // m) * m


def _cdiv(a, b):
    return -(-a // b)


def _apply_activation(y, name):
    """Elementwise activation (VPU/EUP), applied in f32."""
    if name == "relu":
        return jnp.maximum(y, 0.0)
    if name == "tanh":
        return jnp.tanh(y)
    if name == "sigmoid":
        return jax.nn.sigmoid(y)
    if name in ("identity", "linear", "none", None):
        return y
    raise ValueError(f"unsupported activation: {name}")


def _fused_mlp_kernel(*refs, num_layers, hidden_act, output_act):
    """refs = (x_ref, w0, b0, ..., w_{L-1}, b_{L-1}, o_ref).

    x: [Bt, D0] (feature dim UNPADDED), w_l: bf16 [K_l, N_l_pad] (padded
    rows/cols are exactly zero), b_l: f32 [1, N_l_pad], o: [Bt, N_L_pad].
    The whole layer chain stays in vregs/VMEM; only the final activation is
    stored.  Matmuls run bf16 x bf16 -> f32 on the MXU; bias + activation in f32.
    """
    x_ref = refs[0]
    o_ref = refs[-1]
    param_refs = refs[1:-1]

    x = x_ref[...].astype(jnp.float32)
    for l in range(num_layers):
        w = param_refs[2 * l][...]        # bf16
        b = param_refs[2 * l + 1][...]    # f32 [1, N_pad]
        y = jnp.dot(x.astype(w.dtype), w, preferred_element_type=jnp.float32) + b
        act = output_act if l == num_layers - 1 else hidden_act
        x = _apply_activation(y, act)
    o_ref[...] = x.astype(o_ref.dtype)


def _choose_batch_tiling(batch):
    """Returns (padded_batch, tile_rows, num_tiles)."""
    b_pad = _round_up(batch, _SUBLANE)
    if b_pad <= _GRIDLESS_MAX:
        return b_pad, b_pad, 1
    # >=2 tiles so both v7x TensorCores get work; otherwise ~512 rows per tile.
    num_tiles = max(2, _cdiv(b_pad, _TARGET_TILE))
    tile = _round_up(_cdiv(b_pad, num_tiles), _SUBLANE)
    num_tiles = _cdiv(b_pad, tile)
    return tile * num_tiles, tile, num_tiles


def _cost_estimate(rows, din, padded_params, hidden_act, output_act,
                   x_itemsize, out_itemsize, out_pad):
    flops = 0
    transcendentals = 0
    bytes_accessed = rows * din * x_itemsize + rows * out_pad * out_itemsize
    n_layers = len(padded_params)
    for l, (w, b) in enumerate(padded_params):
        k, n = w.shape
        flops += 2 * rows * k * n + rows * n      # matmul + bias
        act = output_act if l == n_layers - 1 else hidden_act
        if act in ("tanh", "sigmoid"):
            transcendentals += rows * n
        bytes_accessed += w.size * w.dtype.itemsize + b.size * b.dtype.itemsize
    return pl.CostEstimate(flops=int(flops), transcendentals=int(transcendentals),
                           bytes_accessed=int(bytes_accessed))


def _vmem_limit_bytes(tile_rows, din, out_pad, padded_params, x_itemsize, out_itemsize):
    """Explicit VMEM budget: single-buffered params + double-buffered x/out tiles
    + f32 intermediates at the widest layer + headroom."""
    param_bytes = sum(w.size * w.dtype.itemsize + b.size * b.dtype.itemsize
                      for w, b in padded_params)
    io_bytes = 2 * tile_rows * din * x_itemsize + 2 * tile_rows * out_pad * out_itemsize
    widest = max(w.shape[1] for w, _ in padded_params)
    inter_bytes = 2 * tile_rows * widest * 4
    total = param_bytes + io_bytes + inter_bytes + (2 << 20)  # 2 MiB headroom
    # NOTE: v7x has only 64 MiB per TC; the streaming fallback (see TODO at top)
    # is required if `total` ever approaches that there.
    return int(min(total, 128 << 20))


def fused_mlp_forward(x, padded_params, hidden_act, output_act, output_size):
    """Run the whole MLP as a single Pallas kernel.

    x: [B, input_size] (unpadded).
    padded_params: list of (W bf16 [K_l, N_l_pad], b f32 [1, N_l_pad]).
    Returns [B, output_size] in x.dtype.
    """
    B, din = x.shape
    assert din == padded_params[0][0].shape[0], "input width mismatch"
    out_pad = padded_params[-1][0].shape[1]
    num_layers = len(padded_params)

    b_full, tile, num_tiles = _choose_batch_tiling(B)

    # Pad ONLY the batch (sublane) axis, and only by a handful of rows; the
    # feature axis stays unpadded (padding it would multiply x HBM traffic).
    if b_full != B:
        x_in = jnp.zeros((b_full, din), dtype=x.dtype).at[:B].set(x)
    else:
        x_in = x

    flat_params = [p for wb in padded_params for p in wb]
    kernel = functools.partial(
        _fused_mlp_kernel, num_layers=num_layers,
        hidden_act=hidden_act, output_act=output_act)

    itemsize = x.dtype.itemsize
    cost = _cost_estimate(b_full, din, padded_params, hidden_act, output_act,
                          itemsize, itemsize, out_pad)
    vmem_limit = _vmem_limit_bytes(tile, din, out_pad, padded_params, itemsize, itemsize)

    if num_tiles == 1:
        # Single block, no grid: everything resident in VMEM for one shot.
        vmem_spec = pl.BlockSpec(memory_space=pltpu.MemorySpace.VMEM)
        out = pl.pallas_call(
            kernel,
            out_shape=jax.ShapeDtypeStruct((b_full, out_pad), x.dtype),
            in_specs=[vmem_spec] * (1 + len(flat_params)),
            out_specs=vmem_spec,
            compiler_params=pltpu.CompilerParams(vmem_limit_bytes=vmem_limit),
            cost_estimate=cost,
        )(x_in, *flat_params)
    else:
        # Batch-tiled "parallel" grid; weights/biases pinned to block (0,0) and
        # single-buffered so they stay resident in VMEM once, across all tiles.
        in_specs = [pl.BlockSpec((tile, din), lambda i: (i, 0))]
        for w, b in padded_params:
            in_specs.append(pl.BlockSpec(w.shape, lambda i: (0, 0),
                                         pipeline_mode=pl.Buffered(1)))
            in_specs.append(pl.BlockSpec(b.shape, lambda i: (0, 0),
                                         pipeline_mode=pl.Buffered(1)))
        out = pl.pallas_call(
            kernel,
            out_shape=jax.ShapeDtypeStruct((b_full, out_pad), x.dtype),
            grid=(num_tiles,),
            in_specs=in_specs,
            # Keep the output lane width at 128 (lane-dense vst); only the
            # batch padding / extra columns are trimmed in the wrapper below.
            out_specs=pl.BlockSpec((tile, out_pad), lambda i: (i, 0)),
            compiler_params=pltpu.CompilerParams(
                dimension_semantics=("parallel",),
                vmem_limit_bytes=vmem_limit),
            cost_estimate=cost,
        )(x_in, *flat_params)

    return out[:B, :output_size]


class GeneralMLPPallas:
    """JAX/Pallas port of GeneralMLP.

    Hidden layers: x = act_hidden(x @ W_l + b_l); final: x = act_out(x @ W_L + b_L).
    """

    def __init__(self, input_size, output_size, hidden_layers,
                 hidden_layer_activation, output_activation, key):
        self.hidden_layer_activation = hidden_layer_activation
        self.output_activation = output_activation
        self.input_size = int(input_size)
        self.output_size = int(output_size)

        sizes = [self.input_size] + [int(h) for h in hidden_layers] + [self.output_size]
        self.params = []          # unpadded f32 masters (for reference checking)
        self.padded_params = []   # bf16 weights / f32 biases, lane-padded, used by kernel
        for layer_idx, (fan_in, fan_out) in enumerate(zip(sizes[:-1], sizes[1:])):
            key, kw, kb = jax.random.split(key, 3)
            # Same distribution family as nn.Linear default:
            # uniform in [-1/sqrt(fan_in), 1/sqrt(fan_in)].
            bound = 1.0 / (fan_in ** 0.5)
            w = jax.random.uniform(kw, (fan_in, fan_out), jnp.float32,
                                   minval=-bound, maxval=bound)
            b = jax.random.uniform(kb, (fan_out,), jnp.float32,
                                   minval=-bound, maxval=bound)
            self.params.append((w, b))

            # Layer 0 keeps the true K = input_size (x is never feature-padded);
            # later layers' K equals the previous layer's padded width, with the
            # padded ROWS exactly zero so sigmoid(0)=0.5 etc. in padded columns
            # of the previous activation can never contaminate real outputs.
            in_dim = fan_in if layer_idx == 0 else _round_up(fan_in, _LANE)
            out_dim = _round_up(fan_out, _LANE)
            w_p = jnp.zeros((in_dim, out_dim), jnp.bfloat16)
            w_p = w_p.at[:fan_in, :fan_out].set(w.astype(jnp.bfloat16))
            b_p = jnp.zeros((1, out_dim), jnp.float32).at[0, :fan_out].set(b)
            self.padded_params.append((w_p, b_p))

    def __call__(self, x):
        return fused_mlp_forward(
            x, self.padded_params,
            self.hidden_layer_activation, self.output_activation,
            self.output_size,
        )


def _reference_forward(mlp, x):
    """Pure-JAX reference.  Uses the same bf16-rounded weights as the kernel
    (f32 math otherwise), so the comparison isolates the bf16-matmul error."""
    n_hidden = len(mlp.params) - 1
    for i, (w, b) in enumerate(mlp.params):
        wq = w.astype(jnp.bfloat16).astype(jnp.float32)
        y = x @ wq + b
        act = mlp.output_activation if i == n_hidden else mlp.hidden_layer_activation
        x = _apply_activation(y, act)
    return x


if __name__ == "__main__":
    key = jax.random.PRNGKey(0)
    key, k_in_small, k_in_big, k_params = jax.random.split(key, 4)

    input_size = 32
    hidden_layers = [64, 48]
    output_size = 16

    mlp = GeneralMLPPallas(
        input_size=input_size,
        output_size=output_size,
        hidden_layers=hidden_layers,
        hidden_layer_activation="relu",
        output_activation="tanh",
        key=k_params,
    )

    # bf16 matmul operands (f32 accumulation): tolerances loosened accordingly.
    ATOL = RTOL = 2e-2

    # Small batch: exercises the gridless single-block fused kernel.
    batch_small = 8
    x_small = jax.random.normal(k_in_small, (batch_small, input_size), dtype=jnp.float32)
    out_small = jax.block_until_ready(mlp(x_small))
    ref_small = _reference_forward(mlp, x_small)
    assert out_small.shape == (batch_small, output_size), out_small.shape
    assert jnp.allclose(out_small, ref_small, atol=ATOL, rtol=RTOL), \
        "small-batch mismatch vs reference"

    # Larger batch: exercises the batch-tiled "parallel" grid (2 tiles of 304
    # rows for B=600) with single-buffered weights resident in VMEM.
    batch_big = 600
    x_big = jax.random.normal(k_in_big, (batch_big, input_size), dtype=jnp.float32)
    out_big = jax.block_until_ready(mlp(x_big))
    ref_big = _reference_forward(mlp, x_big)
    assert out_big.shape == (batch_big, output_size), out_big.shape
    assert jnp.allclose(out_big, ref_big, atol=ATOL, rtol=RTOL), \
        "big-batch mismatch vs reference"

    print("KERNEL_OK")
</pallas_src>

<mosaic_0001>
module attributes {stable_mosaic.version = 11 : i64} {
  func.func @_fused_mlp_kernel(%arg0: memref<8x32xf32, #tpu.memory_space<vmem>>, %arg1: memref<32x128xbf16, #tpu.memory_space<vmem>>, %arg2: memref<1x128xf32, #tpu.memory_space<vmem>>, %arg3: memref<128x128xbf16, #tpu.memory_space<vmem>>, %arg4: memref<1x128xf32, #tpu.memory_space<vmem>>, %arg5: memref<128x128xbf16, #tpu.memory_space<vmem>>, %arg6: memref<1x128xf32, #tpu.memory_space<vmem>>, %arg7: memref<8x128xf32, #tpu.memory_space<vmem>>) attributes {dimension_semantics = [], scalar_prefetch = 0 : i64, scratch_operands = 0 : i64, tpu.core_type = #tpu.core_type<tc>} {
    %c0 = arith.constant 0 : index
    %c0_0 = arith.constant 0 : index
    %0 = vector.load %arg0[%c0, %c0_0] : memref<8x32xf32, #tpu.memory_space<vmem>>, vector<8x32xf32>
    %c0_1 = arith.constant 0 : index
    %c0_2 = arith.constant 0 : index
    %1 = vector.load %arg1[%c0_1, %c0_2] : memref<32x128xbf16, #tpu.memory_space<vmem>>, vector<32x128xbf16>
    %c0_3 = arith.constant 0 : index
    %c0_4 = arith.constant 0 : index
    %2 = vector.load %arg2[%c0_3, %c0_4] : memref<1x128xf32, #tpu.memory_space<vmem>>, vector<1x128xf32>
    %3 = arith.truncf %0 : vector<8x32xf32> to vector<8x32xbf16>
    %cst = arith.constant dense<0.000000e+00> : vector<8x128xf32>
    %4 = tpu.matmul %3, %1, %cst {dimension_numbers = #tpu.dot_dimension_numbers<[1], [0], [0], [1], [0, 0, 1, 1], [], []>} : vector<8x32xbf16>, vector<32x128xbf16>, vector<8x128xf32> -> vector<8x128xf32>
    %5 = vector.broadcast %2 : vector<1x128xf32> to vector<8x128xf32>
    %6 = arith.addf %4, %5 : vector<8x128xf32>
    %cst_5 = arith.constant 0.000000e+00 : f32
    %7 = vector.broadcast %cst_5 : f32 to vector<8x128xf32>
    %8 = arith.maximumf %6, %7 : vector<8x128xf32>
    %c0_6 = arith.constant 0 : index
    %c0_7 = arith.constant 0 : index
    %9 = vector.load %arg3[%c0_6, %c0_7] : memref<128x128xbf16, #tpu.memory_space<vmem>>, vector<128x128xbf16>
    %c0_8 = arith.constant 0 : index
    %c0_9 = arith.constant 0 : index
    %10 = vector.load %arg4[%c0_8, %c0_9] : memref<1x128xf32, #tpu.memory_space<vmem>>, vector<1x128xf32>
    %11 = arith.truncf %8 : vector<8x128xf32> to vector<8x128xbf16>
    %cst_10 = arith.constant dense<0.000000e+00> : vector<8x128xf32>
    %12 = tpu.matmul %11, %9, %cst_10 {dimension_numbers = #tpu.dot_dimension_numbers<[1], [0], [0], [1], [0, 0, 1, 1], [], []>} : vector<8x128xbf16>, vector<128x128xbf16>, vector<8x128xf32> -> vector<8x128xf32>
    %13 = vector.broadcast %10 : vector<1x128xf32> to vector<8x128xf32>
    %14 = arith.addf %12, %13 : vector<8x128xf32>
    %cst_11 = arith.constant 0.000000e+00 : f32
    %15 = vector.broadcast %cst_11 : f32 to vector<8x128xf32>
    %16 = arith.maximumf %14, %15 : vector<8x128xf32>
    %c0_12 = arith.constant 0 : index
    %c0_13 = arith.constant 0 : index
    %17 = vector.load %arg5[%c0_12, %c0_13] : memref<128x128xbf16, #tpu.memory_space<vmem>>, vector<128x128xbf16>
    %c0_14 = arith.constant 0 : index
    %c0_15 = arith.constant 0 : index
    %18 = vector.load %arg6[%c0_14, %c0_15] : memref<1x128xf32, #tpu.memory_space<vmem>>, vector<1x128xf32>
    %19 = arith.truncf %16 : vector<8x128xf32> to vector<8x128xbf16>
    %cst_16 = arith.constant dense<0.000000e+00> : vector<8x128xf32>
    %20 = tpu.matmul %19, %17, %cst_16 {dimension_numbers = #tpu.dot_dimension_numbers<[1], [0], [0], [1], [0, 0, 1, 1], [], []>} : vector<8x128xbf16>, vector<128x128xbf16>, vector<8x128xf32> -> vector<8x128xf32>
    %21 = vector.broadcast %18 : vector<1x128xf32> to vector<8x128xf32>
    %22 = arith.addf %20, %21 : vector<8x128xf32>
    %23 = math.tanh %22 : vector<8x128xf32>
    %c0_17 = arith.constant 0 : index
    %c0_18 = arith.constant 0 : index
    %24 = vector.load %arg7[%c0_17, %c0_18] : memref<8x128xf32, #tpu.memory_space<vmem>>, vector<8x128xf32>
    tpu.vector_store %arg7[%c0_17, %c0_18], %23 {strides = array<i32>} : memref<8x128xf32, #tpu.memory_space<vmem>>, vector<8x128xf32>,
    return
  }
}

</mosaic_0001>

<llo_original>
// kernel: tpu_custom_call.1
$region0: #{tpu_custom_call.1}
  #allocation0 [shape = 'u32[]', space=smem, size = 0x4, offset = 0x4, fixed_abs, tag = 'smem constant byte address 0x4 - core index']
  #allocation1 [shape = 'u32[144,128]{1,0:T(1,128)}', space=vmem, size = 0x12000, scoped, tag = 'internal scratch']
  %s0 = inlined_call_operand.hbm [shape: f32[8,32], index: 0, kind: input, shape index: {}]
  %s1 = inlined_call_operand.hbm [shape: bf16[32,128], index: 1, kind: input, shape index: {}]
  %s2 = inlined_call_operand.vmem [shape: f32[1,128], index: 2, kind: input, shape index: {}]
  %s3 = inlined_call_operand.hbm [shape: bf16[128,128], index: 3, kind: input, shape index: {}]
  %s4 = inlined_call_operand.vmem [shape: f32[1,128], index: 4, kind: input, shape index: {}]
  %s5 = inlined_call_operand.hbm [shape: bf16[128,128], index: 5, kind: input, shape index: {}]
  %s6 = inlined_call_operand.vmem [shape: f32[1,128], index: 6, kind: input, shape index: {}]
  %s7 = inlined_call_operand.hbm [shape: f32[8,128], index: 7, kind: output, shape index: {}]
  %s8 = sld [smem:[#allocation0]]
  $region54: #{tpu_custom_call.1} parent=0
    _
  %s10 = ssub.s32 1, %s8
  %s11 = scalar_select 0, %s10, %s8
  $region1: #{tpu_custom_call.1} parent=0
    #allocation2 [shape = 'u8[4096]{0}', space=vmem, size = 0x1000, scoped, tag = 'input window, operand 0, single buffered']
    #allocation3 [shape = 's32[1]{0}', space=sflag, size = 0x4, scoped, tag = 'scoped memory for tpu_custom_call.1']
    #allocation4 [shape = 's32[1]{0}', space=sflag, size = 0x4, scoped, tag = 'scoped memory for tpu_custom_call.1']
    #allocation5 [shape = 'u8[8192]{0}', space=vmem, size = 0x2000, scoped, tag = 'input window, operand 1, single buffered']
    #allocation6 [shape = 's32[1]{0}', space=sflag, size = 0x4, scoped, tag = 'scoped memory for tpu_custom_call.1']
    #allocation7 [shape = 'u8[32768]{0}', space=vmem, size = 0x8000, scoped, tag = 'input window, operand 3, single buffered']
    #allocation8 [shape = 'u8[32768]{0}', space=vmem, size = 0x8000, scoped, tag = 'input window, operand 5, single buffered']
    #allocation9 [shape = 's32[1]{0}', space=sflag, size = 0x4, scoped, tag = 'scoped memory for tpu_custom_call.1']
    #allocation10 [shape = 'u8[4096]{0}', space=vmem, size = 0x1000, scoped, tag = 'output window, operand 0, single buffered']
    %12 = vsyncpa [#allocation3], 0
    %13 = vsyncpa [#allocation6], 0
    %14 = vsyncpa [#allocation9], 0
    %15 = vsyncpa [#allocation4], 0
    // Predicated region
    $region2: #{tpu_custom_call.1} parent=1 // pred_check
      _
    $region3: #{tpu_custom_call.1} parent=1 // pred_check_branch
      %17 = sbr.rel (0) target = $region5
    $region4: #{tpu_custom_call.1} parent=1 // pred_region
      %s19 = ssub.s32 128, 128
      %20 = vsyncadd [#allocation3], %s19
      %s22 = sshll.u32 [#allocation2], 4
      %s23 = int_to_ptr.vmem [resolvable:$true] %s22
      %25 = dma.hbm_to_vmem [thread:$0]  %s0, 128, %s23, [#allocation3]
    $region5: #{tpu_custom_call.1} parent=1 // pred_fallthru
      _
    // Predicated region
    $region6: #{tpu_custom_call.1} parent=1 // pred_check
      _
    $region7: #{tpu_custom_call.1} parent=1 // pred_check_branch
      %27 = sbr.rel (0) target = $region9
    $region8: #{tpu_custom_call.1} parent=1 // pred_region
      %s29 = ssub.s32 256, 256
      %30 = vsyncadd [#allocation6], %s29
      %s31 = sshll.u32 [#allocation5], 4
      %s32 = int_to_ptr.vmem [resolvable:$true] %s31
      %37 = dma.hbm_to_vmem [thread:$0]  %s1, 256, %s32, [#allocation6], 64, 64, 4
    $region9: #{tpu_custom_call.1} parent=1 // pred_fallthru
      _
    // Predicated region
    $region10: #{tpu_custom_call.1} parent=1 // pred_check
      _
    $region11: #{tpu_custom_call.1} parent=1 // pred_check_branch
      %39 = sbr.rel (0) target = $region13
    $region12: #{tpu_custom_call.1} parent=1 // pred_region
      _
    $region13: #{tpu_custom_call.1} parent=1 // pred_fallthru
      _
    // Predicated region
    $region14: #{tpu_custom_call.1} parent=1 // pred_check
      _
    $region15: #{tpu_custom_call.1} parent=1 // pred_check_branch
      %41 = sbr.rel (0) target = $region17
    $region16: #{tpu_custom_call.1} parent=1 // pred_region
      %s43 = ssub.s32 1024, 1024
      %44 = vsyncadd [#allocation6], %s43
      %s45 = sshll.u32 [#allocation7], 4
      %s46 = int_to_ptr.vmem [resolvable:$true] %s45
      %51 = dma.hbm_to_vmem [thread:$0]  %s3, 1024, %s46, [#allocation6], 64, 64, 4
    $region17: #{tpu_custom_call.1} parent=1 // pred_fallthru
      _
    // Predicated region
    $region18: #{tpu_custom_call.1} parent=1 // pred_check
      _
    $region19: #{tpu_custom_call.1} parent=1 // pred_check_branch
      %53 = sbr.rel (0) target = $region21
    $region20: #{tpu_custom_call.1} parent=1 // pred_region
      _
    $region21: #{tpu_custom_call.1} parent=1 // pred_fallthru
      _
    // Predicated region
    $region22: #{tpu_custom_call.1} parent=1 // pred_check
      _
    $region23: #{tpu_custom_call.1} parent=1 // pred_check_branch
      %55 = sbr.rel (0) target = $region25
    $region24: #{tpu_custom_call.1} parent=1 // pred_region
      %s57 = ssub.s32 1024, 1024
      %58 = vsyncadd [#allocation9], %s57
      %s59 = sshll.u32 [#allocation8], 4
      %s60 = int_to_ptr.vmem [resolvable:$true] %s59
      %65 = dma.hbm_to_vmem [thread:$0]  %s5, 1024, %s60, [#allocation9], 64, 64, 4
    $region25: #{tpu_custom_call.1} parent=1 // pred_fallthru
      _
    // Predicated region
    $region26: #{tpu_custom_call.1} parent=1 // pred_check
      _
    $region27: #{tpu_custom_call.1} parent=1 // pred_check_branch
      %67 = sbr.rel (0) target = $region29
    $region28: #{tpu_custom_call.1} parent=1 // pred_region
      _
    $region29: #{tpu_custom_call.1} parent=1 // pred_fallthru
      _
    // Predicated region
    $region30: #{tpu_custom_call.1} parent=1 // pred_check
      _
    $region31: #{tpu_custom_call.1} parent=1 // pred_check_branch
      %69 = sbr.rel (0) target = $region33
    $region32: #{tpu_custom_call.1} parent=1 // pred_region
      %70 = dma.done [#allocation3], 128
    $region33: #{tpu_custom_call.1} parent=1 // pred_fallthru
      _
    // Predicated region
    $region34: #{tpu_custom_call.1} parent=1 // pred_check
      _
    $region35: #{tpu_custom_call.1} parent=1 // pred_check_branch
      %72 = sbr.rel (0) target = $region37
    $region36: #{tpu_custom_call.1} parent=1 // pred_region
      %73 = dma.done [#allocation6], 256
    $region37: #{tpu_custom_call.1} parent=1 // pred_fallthru
      _
    // Predicated region
    $region38: #{tpu_custom_call.1} parent=1 // pred_check
      _
    $region39: #{tpu_custom_call.1} parent=1 // pred_check_branch
      %75 = sbr.rel (0) target = $region41
    $region40: #{tpu_custom_call.1} parent=1 // pred_region
      %76 = dma.done [#allocation6], 1024
    $region41: #{tpu_custom_call.1} parent=1 // pred_fallthru
      _
    // Predicated region
    $region42: #{tpu_custom_call.1} parent=1 // pred_check
      _
    $region43: #{tpu_custom_call.1} parent=1 // pred_check_branch
      %78 = sbr.rel (0) target = $region45
    $region44: #{tpu_custom_call.1} parent=1 // pred_region
      %79 = dma.done [#allocation9], 1024
    $region45: #{tpu_custom_call.1} parent=1 // pred_fallthru
      _
    %v81 = vld [vmem:[#allocation2] sm:$0xff]
    %v82 = vld [vmem:[#allocation5] sm:$0xf]
    %v83 = vld [vmem:[#allocation5 + $0x4] sm:$0xf]
    %v84 = vld [vmem:[#allocation5 + $0x8] sm:$0xf]
    %v85 = vld [vmem:[#allocation5 + $0xc] sm:$0xf]
    %v86 = vld [vmem:[%s2] sm:$0x1]
    %v87 = vpack.c.bf16 %v81, %v81
    %v89 = vlaneseq
    %v90 = vshrl.u32 %v89, 7
    %v91 = vsub.s32 0, %v90
    %v92 = vrot.slane %v86, %v91
    %v98 = vunpack.c.l.b16 %v82
    %v99 = vunpack.c.l.b16 %v83
    %v100 = vunpack.c.l.b16 %v84
    %v101 = vunpack.c.l.b16 %v85
    %v102 = vpack.c.b16 %v99, %v98
    %v103 = vpack.c.b16 %v101, %v100
    %vm106 = vcmask 261120
    %v108 = vsel %vm106, %v87, 0
    %110 = vmatprep.subr.bf16.mxu0 0
    %111 = vmatpush1.bf16.msra.mxu0 %v102
    %112 = vmatprep.subr.bf16.mxu0 0
    %113 = vmatpush1.bf16.msra.mxu0 %v103
    %114 = vmatprep.subr.bf16.mxu0 0
    %115 = vmatpush1.bf16.msra.mxu0 0
    %116 = vmatprep.subr.bf16.mxu0 0
    %117 = vmatpush1.bf16.msra.mxu0 0
    %118 = vmatprep.subr.bf16.mxu0 0
    %119 = vmatpush1.bf16.msra.mxu0 0
    %120 = vmatprep.subr.bf16.mxu0 0
    %121 = vmatpush1.bf16.msra.mxu0 0
    %122 = vmatprep.subr.bf16.mxu0 0
    %123 = vmatpush1.bf16.msra.mxu0 0
    %124 = vmatprep.subr.bf16.mxu0 0
    %125 = vmatpush1.bf16.msra.mxu0 0
    %126 = vmatprep.subr.bf16.mxu0 0
    %127 = vmatpush1.bf16.msra.mxu0 0
    %128 = vmatprep.subr.bf16.mxu0 0
    %129 = vmatpush1.bf16.msra.mxu0 0
    %130 = vmatprep.subr.bf16.mxu0 0
    %131 = vmatpush1.bf16.msra.mxu0 0
    %132 = vmatprep.subr.bf16.mxu0 0
    %133 = vmatpush1.bf16.msra.mxu0 0
    %134 = vmatprep.subr.bf16.mxu0 0
    %135 = vmatpush1.bf16.msra.mxu0 0
    %136 = vmatprep.subr.bf16.mxu0 0
    %137 = vmatpush1.bf16.msra.mxu0 0
    %138 = vmatprep.subr.bf16.mxu0 0
    %139 = vmatpush1.bf16.msra.mxu0 0
    %140 = vmatprep.subr.bf16.mxu0 0
    %141 = vmatpush1.bf16.msra.mxu0 0
    %142 = vmatprep.mubr.bf16.mxu0 0
    %143 = vmatmul.mubr.bf16.gmra.mrb[0].mxu0 %v108
    %v144 = vpop.f32.mrb[0].mxu0
    %v145 = vadd.f32 %v92, %v144
    %v146 = vpop.f32.mrb[0].mxu0
    %v147 = vpop.f32.mrb[0].mxu0
    %v148 = vpop.f32.mrb[0].mxu0
    %149 = vdwg.mxu0
    %v150 = vmax.f32 %v145, 0.0
    %v151 = vld [vmem:[#allocation7] sm:$0xf]
    %v152 = vld [vmem:[#allocation7 + $0x4] sm:$0xf]
    %v153 = vld [vmem:[#allocation7 + $0x8] sm:$0xf]
    %v154 = vld [vmem:[#allocation7 + $0xc] sm:$0xf]
    %v155 = vld [vmem:[#allocation7 + $0x10] sm:$0xf]
    %v156 = vld [vmem:[#allocation7 + $0x14] sm:$0xf]
    %v157 = vld [vmem:[#allocation7 + $0x18] sm:$0xf]
    %v158 = vld [vmem:[#allocation7 + $0x1c] sm:$0xf]
    %v159 = vld [vmem:[#allocation7 + $0x20] sm:$0xf]
    %v160 = vld [vmem:[#allocation7 + $0x24] sm:$0xf]
    %v161 = vld [vmem:[#allocation7 + $0x28] sm:$0xf]
    %v162 = vld [vmem:[#allocation7 + $0x2c] sm:$0xf]
    %v163 = vld [vmem:[#allocation7 + $0x30] sm:$0xf]
    %v164 = vld [vmem:[#allocation7 + $0x34] sm:$0xf]
    %v165 = vld [vmem:[#allocation7 + $0x38] sm:$0xf]
    %v166 = vld [vmem:[#allocation7 + $0x3c] sm:$0xf]
    %v167 = vld [vmem:[%s4] sm:$0x1]
    %v168 = vpack.c.bf16 %v150, %v150
    %v170 = vlaneseq
    %v171 = vshrl.u32 %v170, 7
    %v172 = vsub.s32 0, %v171
    %v173 = vrot.slane %v167, %v172
    %v191 = vunpack.c.l.b16 %v151
    %v192 = vunpack.c.l.b16 %v152
    %v193 = vunpack.c.l.b16 %v153
    %v194 = vunpack.c.l.b16 %v154
    %v195 = vunpack.c.l.b16 %v155
    %v196 = vunpack.c.l.b16 %v156
    %v197 = vunpack.c.l.b16 %v157
    %v198 = vunpack.c.l.b16 %v158
    %v199 = vunpack.c.l.b16 %v159
    %v200 = vunpack.c.l.b16 %v160
    %v201 = vunpack.c.l.b16 %v161
    %v202 = vunpack.c.l.b16 %v162
    %v203 = vunpack.c.l.b16 %v163
    %v204 = vunpack.c.l.b16 %v164
    %v205 = vunpack.c.l.b16 %v165
    %v206 = vunpack.c.l.b16 %v166
    %v207 = vpack.c.b16 %v192, %v191
    %v208 = vpack.c.b16 %v194, %v193
    %v209 = vpack.c.b16 %v196, %v195
    %v210 = vpack.c.b16 %v198, %v197
    %v211 = vpack.c.b16 %v200, %v199
    %v212 = vpack.c.b16 %v202, %v201
    %v213 = vpack.c.b16 %v204, %v203
    %v214 = vpack.c.b16 %v206, %v205
    %223 = vmatprep.subr.bf16.mxu0 0
    %224 = vmatpush1.bf16.msra.mxu0 %v207
    %225 = vmatprep.subr.bf16.mxu0 0
    %226 = vmatpush1.bf16.msra.mxu0 %v208
    %227 = vmatprep.subr.bf16.mxu0 0
    %228 = vmatpush1.bf16.msra.mxu0 %v209
    %229 = vmatprep.subr.bf16.mxu0 0
    %230 = vmatpush1.bf16.msra.mxu0 %v210
    %231 = vmatprep.subr.bf16.mxu0 0
    %232 = vmatpush1.bf16.msra.mxu0 %v211
    %233 = vmatprep.subr.bf16.mxu0 0
    %234 = vmatpush1.bf16.msra.mxu0 %v212
    %235 = vmatprep.subr.bf16.mxu0 0
    %236 = vmatpush1.bf16.msra.mxu0 %v213
    %237 = vmatprep.subr.bf16.mxu0 0
    %238 = vmatpush1.bf16.msra.mxu0 %v214
    %239 = vmatprep.subr.bf16.mxu0 0
    %240 = vmatpush1.bf16.msra.mxu0 0
    %241 = vmatprep.subr.bf16.mxu0 0
    %242 = vmatpush1.bf16.msra.mxu0 0
    %243 = vmatprep.subr.bf16.mxu0 0
    %244 = vmatpush1.bf16.msra.mxu0 0
    %245 = vmatprep.subr.bf16.mxu0 0
    %246 = vmatpush1.bf16.msra.mxu0 0
    %247 = vmatprep.subr.bf16.mxu0 0
    %248 = vmatpush1.bf16.msra.mxu0 0
    %249 = vmatprep.subr.bf16.mxu0 0
    %250 = vmatpush1.bf16.msra.mxu0 0
    %251 = vmatprep.subr.bf16.mxu0 0
    %252 = vmatpush1.bf16.msra.mxu0 0
    %253 = vmatprep.subr.bf16.mxu0 0
    %254 = vmatpush1.bf16.msra.mxu0 0
    %255 = vmatprep.mubr.bf16.mxu0 0
    %256 = vmatmul.mubr.bf16.gmra.mrb[0].mxu0 %v168
    %v257 = vpop.f32.mrb[0].mxu0
    %v258 = vadd.f32 %v173, %v257
    %v259 = vpop.f32.mrb[0].mxu0
    %v260 = vpop.f32.mrb[0].mxu0
    %v261 = vpop.f32.mrb[0].mxu0
    %262 = vdwg.mxu0
    %v263 = vmax.f32 %v258, 0.0
    %v264 = vld [vmem:[#allocation8] sm:$0xf]
    %v265 = vld [vmem:[#allocation8 + $0x4] sm:$0xf]
    %v266 = vld [vmem:[#allocation8 + $0x8] sm:$0xf]
    %v267 = vld [vmem:[#allocation8 + $0xc] sm:$0xf]
    %v268 = vld [vmem:[#allocation8 + $0x10] sm:$0xf]
    %v269 = vld [vmem:[#allocation8 + $0x14] sm:$0xf]
    %v270 = vld [vmem:[#allocation8 + $0x18] sm:$0xf]
    %v271 = vld [vmem:[#allocation8 + $0x1c] sm:$0xf]
    %v272 = vld [vmem:[#allocation8 + $0x20] sm:$0xf]
    %v273 = vld [vmem:[#allocation8 + $0x24] sm:$0xf]
    %v274 = vld [vmem:[#allocation8 + $0x28] sm:$0xf]
    %v275 = vld [vmem:[#allocation8 + $0x2c] sm:$0xf]
    %v276 = vld [vmem:[#allocation8 + $0x30] sm:$0xf]
    %v277 = vld [vmem:[#allocation8 + $0x34] sm:$0xf]
    %v278 = vld [vmem:[#allocation8 + $0x38] sm:$0xf]
    %v279 = vld [vmem:[#allocation8 + $0x3c] sm:$0xf]
    %v280 = vld [vmem:[%s6] sm:$0x1]
    %v281 = vpack.c.bf16 %v263, %v263
    %v283 = vlaneseq
    %v284 = vshrl.u32 %v283, 7
    %v285 = vsub.s32 0, %v284
    %v286 = vrot.slane %v280, %v285
    %v304 = vunpack.c.l.b16 %v264
    %v305 = vunpack.c.l.b16 %v265
    %v306 = vunpack.c.l.b16 %v266
    %v307 = vunpack.c.l.b16 %v267
    %v308 = vunpack.c.l.b16 %v268
    %v309 = vunpack.c.l.b16 %v269
    %v310 = vunpack.c.l.b16 %v270
    %v311 = vunpack.c.l.b16 %v271
    %v312 = vunpack.c.l.b16 %v272
    %v313 = vunpack.c.l.b16 %v273
    %v314 = vunpack.c.l.b16 %v274
    %v315 = vunpack.c.l.b16 %v275
    %v316 = vunpack.c.l.b16 %v276
    %v317 = vunpack.c.l.b16 %v277
    %v318 = vunpack.c.l.b16 %v278
    %v319 = vunpack.c.l.b16 %v279
    %v320 = vpack.c.b16 %v305, %v304
    %v321 = vpack.c.b16 %v307, %v306
    %v322 = vpack.c.b16 %v309, %v308
    %v323 = vpack.c.b16 %v311, %v310
    %v324 = vpack.c.b16 %v313, %v312
    %v325 = vpack.c.b16 %v315, %v314
    %v326 = vpack.c.b16 %v317, %v316
    %v327 = vpack.c.b16 %v319, %v318
    %336 = vmatprep.subr.bf16.mxu0 0
    %337 = vmatpush1.bf16.msra.mxu0 %v320
    %338 = vmatprep.subr.bf16.mxu0 0
    %339 = vmatpush1.bf16.msra.mxu0 %v321
    %340 = vmatprep.subr.bf16.mxu0 0
    %341 = vmatpush1.bf16.msra.mxu0 %v322
    %342 = vmatprep.subr.bf16.mxu0 0
    %343 = vmatpush1.bf16.msra.mxu0 %v323
    %344 = vmatprep.subr.bf16.mxu0 0
    %345 = vmatpush1.bf16.msra.mxu0 %v324
    %346 = vmatprep.subr.bf16.mxu0 0
    %347 = vmatpush1.bf16.msra.mxu0 %v325
    %348 = vmatprep.subr.bf16.mxu0 0
    %349 = vmatpush1.bf16.msra.mxu0 %v326
    %350 = vmatprep.subr.bf16.mxu0 0
    %351 = vmatpush1.bf16.msra.mxu0 %v327
    %352 = vmatprep.subr.bf16.mxu0 0
    %353 = vmatpush1.bf16.msra.mxu0 0
    %354 = vmatprep.subr.bf16.mxu0 0
    %355 = vmatpush1.bf16.msra.mxu0 0
    %356 = vmatprep.subr.bf16.mxu0 0
    %357 = vmatpush1.bf16.msra.mxu0 0
    %358 = vmatprep.subr.bf16.mxu0 0
    %359 = vmatpush1.bf16.msra.mxu0 0
    %360 = vmatprep.subr.bf16.mxu0 0
    %361 = vmatpush1.bf16.msra.mxu0 0
    %362 = vmatprep.subr.bf16.mxu0 0
    %363 = vmatpush1.bf16.msra.mxu0 0
    %364 = vmatprep.subr.bf16.mxu0 0
    %365 = vmatpush1.bf16.msra.mxu0 0
    %366 = vmatprep.subr.bf16.mxu0 0
    %367 = vmatpush1.bf16.msra.mxu0 0
    %368 = vmatprep.mubr.bf16.mxu0 0
    %369 = vmatmul.mubr.bf16.gmra.mrb[0].mxu0 %v281
    %v370 = vpop.f32.mrb[0].mxu0
    %v371 = vadd.f32 %v286, %v370
    %v372 = vpop.f32.mrb[0].mxu0
    %v373 = vpop.f32.mrb[0].mxu0
    %v374 = vpop.f32.mrb[0].mxu0
    %375 = vdwg.mxu0
    %v376 = vtanh.pop %v371
    %377 = vst [vmem:[#allocation10] sm:$0xff] %v376
    // Predicated region
    $region46: #{tpu_custom_call.1} parent=1 // pred_check
      _
    $region47: #{tpu_custom_call.1} parent=1 // pred_check_branch
      %379 = sbr.rel (0) target = $region49
    $region48: #{tpu_custom_call.1} parent=1 // pred_region
      %s381 = ssub.s32 128, 128
      %382 = vsyncadd [#allocation4], %s381
      %s384 = sshll.u32 [#allocation10], 4
      %s385 = int_to_ptr.vmem [resolvable:$true] %s384
      %387 = dma.vmem_to_hbm [thread:$0]  %s385, 128, %s7, [#allocation4]
    $region49: #{tpu_custom_call.1} parent=1 // pred_fallthru
      _
    // Predicated region
    $region50: #{tpu_custom_call.1} parent=1 // pred_check
      _
    $region51: #{tpu_custom_call.1} parent=1 // pred_check_branch
      %389 = sbr.rel (0) target = $region53
    $region52: #{tpu_custom_call.1} parent=1 // pred_region
      %390 = dma.done [#allocation4], 128
    $region53: #{tpu_custom_call.1} parent=1 // pred_fallthru
      _
    %391 = vsyncpa [#allocation3], 1
    %392 = vsyncpa [#allocation6], 1
    %393 = vsyncpa [#allocation9], 1
    %394 = vsyncpa [#allocation4], 1

</llo_original>
